<compile_context>
chip_gen: v5e
topology: v5e:2x2
jax: 0.10.0
libtpu: 0.0.40
codegen_flags: <defaults>
</compile_context>

<pallas_src>
import functools
import math

import jax
import jax.numpy as jnp
from jax.experimental import pallas as pl
from jax.experimental.pallas import tpu as pltpu


def _tpu_defaults():
    """Return (max_block, vmem_limit_bytes) tuned per TPU generation."""
    kind = ""
    try:
        kind = jax.devices()[0].device_kind.lower()
    except Exception:  # pragma: no cover - defensive
        pass
    if "v5 lite" in kind or "v5e" in kind or "v5lite" in kind:
        return 128, 64 * 1024 * 1024   # 128-wide MXU; 128 MiB physical VMEM
    if "v6" in kind:
        return 256, 96 * 1024 * 1024   # 256-wide MXU; 128 MiB physical VMEM
    if "v7" in kind:
        return 256, 48 * 1024 * 1024   # 256-wide MXU; only 64 MiB VMEM per TC
    return 128, 48 * 1024 * 1024       # conservative fallback


def _proj_kernel(x_ref, wq_ref, wk_ref, wv_ref, q_ref, k_ref, v_ref, *, scale):
    """Project one (block_t, D) tile of x into q (scaled), k, v.

    Three separate dot_generals against the same resident x tile (not a fused
    [Wv | Wk] matmul) so slices stay lane-aligned for arbitrary D; results are
    cast back to the storage dtype immediately.
    """
    x = x_ref[0]                                                  # (bt, D) native dtype
    q = jax.lax.dot_general(x, wq_ref[...], (((1,), (0,)), ((), ())),
                            preferred_element_type=jnp.float32)
    q_ref[0] = (q * scale).astype(q_ref.dtype)                    # fold 1/sqrt(K) here
    k = jax.lax.dot_general(x, wk_ref[...], (((1,), (0,)), ((), ())),
                            preferred_element_type=jnp.float32)
    k_ref[0] = k.astype(k_ref.dtype)
    v = jax.lax.dot_general(x, wv_ref[...], (((1,), (0,)), ((), ())),
                            preferred_element_type=jnp.float32)
    v_ref[0] = v.astype(v_ref.dtype)


def _flash_kernel(q_ref, k_ref, v_ref, o_ref, m_scr, l_scr, acc_scr,
                  *, block_q, block_kv, mask_value):
    """Online-softmax causal attention over pre-projected q/k/v tiles."""
    qi = pl.program_id(1)
    ki = pl.program_id(2)
    num_kv = pl.num_programs(2)

    q_start = qi * block_q
    k_start = ki * block_kv
    q_last = q_start + (block_q - 1)
    k_last = k_start + (block_kv - 1)

    @pl.when(ki == 0)
    def _init():
        m_scr[...] = jnp.full(m_scr.shape, -jnp.inf, dtype=m_scr.dtype)
        l_scr[...] = jnp.zeros(l_scr.shape, dtype=l_scr.dtype)
        acc_scr[...] = jnp.zeros(acc_scr.shape, dtype=acc_scr.dtype)

    def _update(apply_mask):
        q = q_ref[0]                                               # (bq, K)  native dtype
        k = k_ref[0]                                               # (bkv, K)
        v = v_ref[0]                                               # (bkv, D)
        # q @ k^T, contracting the last dims -> no materialized k.T.
        s = jax.lax.dot_general(q, k, (((1,), (1,)), ((), ())),
                                preferred_element_type=jnp.float32)  # (bq, bkv)
        if apply_mask:
            row = q_start + jax.lax.broadcasted_iota(
                jnp.int32, (block_q, block_kv), 0)
            col = k_start + jax.lax.broadcasted_iota(
                jnp.int32, (block_q, block_kv), 1)
            s = jnp.where(row >= col, s, mask_value)

        # Online softmax (f32 vector math; v5e-friendly).
        m_prev = m_scr[...]
        m_new = jnp.maximum(m_prev, jnp.max(s, axis=-1, keepdims=True))
        alpha = jnp.exp(m_prev - m_new)
        p = jnp.exp(s - m_new)                                     # (bq, bkv) f32
        l_scr[...] = alpha * l_scr[...] + jnp.sum(p, axis=-1, keepdims=True)
        acc_scr[...] = alpha * acc_scr[...] + jax.lax.dot_general(
            p.astype(v.dtype), v, (((1,), (0,)), ((), ())),
            preferred_element_type=jnp.float32)
        m_scr[...] = m_new

    # Tile is entirely at or below the diagonal: no masking work needed.
    @pl.when(k_last <= q_start)
    def _no_mask():
        _update(apply_mask=False)

    # Tile straddles the diagonal: apply the causal mask.  Tiles entirely
    # above the diagonal (k_start > q_last) are skipped entirely.
    @pl.when(jnp.logical_and(k_start <= q_last, k_last > q_start))
    def _with_mask():
        _update(apply_mask=True)

    @pl.when(ki == num_kv - 1)
    def _finalize():
        # Deferred normalization on the (bq, D) output; reciprocal on the EUP.
        inv_l = pl.reciprocal(l_scr[...], approx=True)
        o_ref[0] = (acc_scr[...] * inv_l).astype(o_ref.dtype)


def head_forward(x, wq, wk, wv, head_size, *,
                 block_q=None, block_kv=None, block_proj=None):
    """x: (B, T, D); wq/wk: (D, K); wv: (D, D). Returns (B, T, D)."""
    B, T, D = x.shape
    K = wq.shape[1]

    max_block, vmem_limit = _tpu_defaults()
    if block_q is None:
        block_q = min(T, max_block)
    if block_kv is None:
        block_kv = min(T, max_block)
    if block_proj is None:
        block_proj = min(T, max_block)
    assert T % block_q == 0 and T % block_kv == 0 and T % block_proj == 0, \
        "T must tile evenly"

    scale = 1.0 / math.sqrt(head_size)

    # ---- Stage 1: projections, once per token (hoisted out of the KV loop).
    q, k, v = pl.pallas_call(
        functools.partial(_proj_kernel, scale=scale),
        out_shape=(jax.ShapeDtypeStruct((B, T, K), x.dtype),
                   jax.ShapeDtypeStruct((B, T, K), x.dtype),
                   jax.ShapeDtypeStruct((B, T, D), x.dtype)),
        grid_spec=pltpu.PrefetchScalarGridSpec(
            num_scalar_prefetch=0,
            grid=(B, T // block_proj),
            in_specs=[
                pl.BlockSpec((1, block_proj, D), lambda b, ti: (b, ti, 0)),
                pl.BlockSpec((D, K), lambda b, ti: (0, 0)),   # weights resident
                pl.BlockSpec((D, K), lambda b, ti: (0, 0)),
                pl.BlockSpec((D, D), lambda b, ti: (0, 0)),
            ],
            out_specs=[
                pl.BlockSpec((1, block_proj, K), lambda b, ti: (b, ti, 0)),
                pl.BlockSpec((1, block_proj, K), lambda b, ti: (b, ti, 0)),
                pl.BlockSpec((1, block_proj, D), lambda b, ti: (b, ti, 0)),
            ],
        ),
        compiler_params=pltpu.CompilerParams(
            dimension_semantics=("parallel", "parallel"),
            vmem_limit_bytes=vmem_limit,
        ),
    )(x, wq, wk, wv)

    # ---- Stage 2: flash-attention loop over the projected tiles.
    def q_index_map(b, qi, ki):
        return (b, qi, 0)

    def kv_index_map(b, qi, ki):
        # Clamp at the last causally-valid KV block for this query tile so
        # fully-masked steps re-reference the resident block (no new DMA).
        last_valid = (qi * block_q + (block_q - 1)) // block_kv
        return (b, jnp.minimum(ki, last_valid), 0)

    kernel = functools.partial(
        _flash_kernel, block_q=block_q, block_kv=block_kv, mask_value=-1e30)

    grid = (B, T // block_q, T // block_kv)

    return pl.pallas_call(
        kernel,
        out_shape=jax.ShapeDtypeStruct((B, T, D), x.dtype),
        grid_spec=pltpu.PrefetchScalarGridSpec(
            num_scalar_prefetch=0,
            grid=grid,
            in_specs=[
                pl.BlockSpec((1, block_q, K), q_index_map),
                pl.BlockSpec((1, block_kv, K), kv_index_map),
                pl.BlockSpec((1, block_kv, D), kv_index_map),
            ],
            out_specs=pl.BlockSpec((1, block_q, D), q_index_map),
            scratch_shapes=[
                pltpu.VMEM((block_q, 1), jnp.float32),   # running max m
                pltpu.VMEM((block_q, 1), jnp.float32),   # running denom l
                pltpu.VMEM((block_q, D), jnp.float32),   # un-normalized output
            ],
        ),
        compiler_params=pltpu.CompilerParams(
            dimension_semantics=("parallel", "parallel", "arbitrary"),
            vmem_limit_bytes=vmem_limit,
        ),
    )(q, k, v)


def head_reference(x, wq, wk, wv, head_size):
    """Pure-JAX reference mirroring the PyTorch forward (f32 math)."""
    B, T, D = x.shape
    q = x @ wq
    k = x @ wk
    v = x @ wv
    scores = jnp.einsum("btk,bsk->bts", q, k)
    tril = jnp.tril(jnp.ones((T, T), dtype=bool))
    scores = jnp.where(tril[None], scores, -jnp.inf) / jnp.sqrt(
        jnp.asarray(head_size, x.dtype))
    attn = jax.nn.softmax(scores, axis=2)
    return attn @ v


if __name__ == "__main__":
    # Small shapes consistent with the module's forward.
    B, T, D = 2, 8, 32          # batch, context_window_size, embed_size
    K = 16                      # head_size

    key = jax.random.PRNGKey(0)
    kx, kq, kk, kv = jax.random.split(key, 4)

    # bf16 storage: all matmuls consume native bf16 with f32 accumulation;
    # softmax / scaling vector math stays in f32 (v5e has no bf16 VPU/EUP).
    dtype = jnp.bfloat16
    bound = 1.0 / math.sqrt(D)
    x = jax.random.normal(kx, (B, T, D), dtype=jnp.float32).astype(dtype)
    wq = jax.random.uniform(kq, (D, K), jnp.float32, -bound, bound).astype(dtype)
    wk = jax.random.uniform(kk, (D, K), jnp.float32, -bound, bound).astype(dtype)
    wv = jax.random.uniform(kv, (D, D), jnp.float32, -bound, bound).astype(dtype)

    out = head_forward(x, wq, wk, wv, K)
    out = jax.block_until_ready(out)

    ref = head_reference(x.astype(jnp.float32), wq.astype(jnp.float32),
                         wk.astype(jnp.float32), wv.astype(jnp.float32), K)

    assert out.shape == (B, T, D)
    max_err = float(jnp.max(jnp.abs(out.astype(jnp.float32) - ref)))
    assert max_err < 5e-2, f"mismatch vs reference: max abs err {max_err}"

    print("KERNEL_OK")
</pallas_src>

<mosaic_0001>
module attributes {stable_mosaic.version = 11 : i64} {
  func.func @_proj_kernel(%arg0: i32, %arg1: i32, %arg2: memref<1x8x32xbf16, #tpu.memory_space<vmem>>, %arg3: memref<32x16xbf16, #tpu.memory_space<vmem>>, %arg4: memref<32x16xbf16, #tpu.memory_space<vmem>>, %arg5: memref<32x32xbf16, #tpu.memory_space<vmem>>, %arg6: memref<1x8x16xbf16, #tpu.memory_space<vmem>>, %arg7: memref<1x8x16xbf16, #tpu.memory_space<vmem>>, %arg8: memref<1x8x32xbf16, #tpu.memory_space<vmem>>) attributes {dimension_semantics = [#tpu.dimension_semantics<parallel>, #tpu.dimension_semantics<parallel>], iteration_bounds = array<i64: 2, 1>, scalar_prefetch = 0 : i64, scratch_operands = 0 : i64, tpu.core_type = #tpu.core_type<tc>, window_params = [{transform_indices = @transform_0, window_bounds = array<i64: 1, 8, 32>}, {pipeline_mode = #tpu.pipeline_mode<synchronous>, transform_indices = @transform_1, window_bounds = array<i64: 32, 16>}, {pipeline_mode = #tpu.pipeline_mode<synchronous>, transform_indices = @transform_2, window_bounds = array<i64: 32, 16>}, {pipeline_mode = #tpu.pipeline_mode<synchronous>, transform_indices = @transform_3, window_bounds = array<i64: 32, 32>}, {transform_indices = @transform_4, window_bounds = array<i64: 1, 8, 16>}, {transform_indices = @transform_5, window_bounds = array<i64: 1, 8, 16>}, {transform_indices = @transform_6, window_bounds = array<i64: 1, 8, 32>}]} {
    %c0 = arith.constant 0 : index
    %c0_0 = arith.constant 0 : index
    %c0_1 = arith.constant 0 : index
    %0 = vector.load %arg2[%c0, %c0_0, %c0_1] : memref<1x8x32xbf16, #tpu.memory_space<vmem>>, vector<1x8x32xbf16>
    %1 = vector.shape_cast %0 : vector<1x8x32xbf16> to vector<8x32xbf16>
    %c0_2 = arith.constant 0 : index
    %c0_3 = arith.constant 0 : index
    %2 = vector.load %arg3[%c0_2, %c0_3] : memref<32x16xbf16, #tpu.memory_space<vmem>>, vector<32x16xbf16>
    %cst = arith.constant dense<0.000000e+00> : vector<8x16xf32>
    %3 = tpu.matmul %1, %2, %cst {dimension_numbers = #tpu.dot_dimension_numbers<[1], [0], [0], [1], [0, 0, 1, 1], [], []>} : vector<8x32xbf16>, vector<32x16xbf16>, vector<8x16xf32> -> vector<8x16xf32>
    %cst_4 = arith.constant 2.500000e-01 : f32
    %4 = vector.broadcast %cst_4 : f32 to vector<8x16xf32>
    %5 = arith.mulf %3, %4 : vector<8x16xf32>
    %6 = arith.truncf %5 : vector<8x16xf32> to vector<8x16xbf16>
    %c0_5 = arith.constant 0 : index
    %c0_6 = arith.constant 0 : index
    %c0_7 = arith.constant 0 : index
    %7 = vector.load %arg6[%c0_5, %c0_6, %c0_7] : memref<1x8x16xbf16, #tpu.memory_space<vmem>>, vector<1x8x16xbf16>
    %8 = vector.shape_cast %7 : vector<1x8x16xbf16> to vector<8x16xbf16>
    %9 = vector.shape_cast %6 : vector<8x16xbf16> to vector<1x8x16xbf16>
    tpu.vector_store %arg6[%c0_5, %c0_6, %c0_7], %9 {strides = array<i32>} : memref<1x8x16xbf16, #tpu.memory_space<vmem>>, vector<1x8x16xbf16>,
    %c0_8 = arith.constant 0 : index
    %c0_9 = arith.constant 0 : index
    %10 = vector.load %arg4[%c0_8, %c0_9] : memref<32x16xbf16, #tpu.memory_space<vmem>>, vector<32x16xbf16>
    %cst_10 = arith.constant dense<0.000000e+00> : vector<8x16xf32>
    %11 = tpu.matmul %1, %10, %cst_10 {dimension_numbers = #tpu.dot_dimension_numbers<[1], [0], [0], [1], [0, 0, 1, 1], [], []>} : vector<8x32xbf16>, vector<32x16xbf16>, vector<8x16xf32> -> vector<8x16xf32>
    %12 = arith.truncf %11 : vector<8x16xf32> to vector<8x16xbf16>
    %c0_11 = arith.constant 0 : index
    %c0_12 = arith.constant 0 : index
    %c0_13 = arith.constant 0 : index
    %13 = vector.load %arg7[%c0_11, %c0_12, %c0_13] : memref<1x8x16xbf16, #tpu.memory_space<vmem>>, vector<1x8x16xbf16>
    %14 = vector.shape_cast %13 : vector<1x8x16xbf16> to vector<8x16xbf16>
    %15 = vector.shape_cast %12 : vector<8x16xbf16> to vector<1x8x16xbf16>
    tpu.vector_store %arg7[%c0_11, %c0_12, %c0_13], %15 {strides = array<i32>} : memref<1x8x16xbf16, #tpu.memory_space<vmem>>, vector<1x8x16xbf16>,
    %c0_14 = arith.constant 0 : index
    %c0_15 = arith.constant 0 : index
    %16 = vector.load %arg5[%c0_14, %c0_15] : memref<32x32xbf16, #tpu.memory_space<vmem>>, vector<32x32xbf16>
    %cst_16 = arith.constant dense<0.000000e+00> : vector<8x32xf32>
    %17 = tpu.matmul %1, %16, %cst_16 {dimension_numbers = #tpu.dot_dimension_numbers<[1], [0], [0], [1], [0, 0, 1, 1], [], []>} : vector<8x32xbf16>, vector<32x32xbf16>, vector<8x32xf32> -> vector<8x32xf32>
    %18 = arith.truncf %17 : vector<8x32xf32> to vector<8x32xbf16>
    %c0_17 = arith.constant 0 : index
    %c0_18 = arith.constant 0 : index
    %c0_19 = arith.constant 0 : index
    %19 = vector.load %arg8[%c0_17, %c0_18, %c0_19] : memref<1x8x32xbf16, #tpu.memory_space<vmem>>, vector<1x8x32xbf16>
    %20 = vector.shape_cast %19 : vector<1x8x32xbf16> to vector<8x32xbf16>
    %21 = vector.shape_cast %18 : vector<8x32xbf16> to vector<1x8x32xbf16>
    tpu.vector_store %arg8[%c0_17, %c0_18, %c0_19], %21 {strides = array<i32>} : memref<1x8x32xbf16, #tpu.memory_space<vmem>>, vector<1x8x32xbf16>,
    return
  }
  func.func @transform_0(%arg0: i32, %arg1: i32) -> (i32, i32, i32) {
    %c0_i32 = arith.constant 0 : i32
    %c0_i32_0 = arith.constant 0 : i32
    return %arg0, %arg1, %c0_i32 : i32, i32, i32
  }
  func.func @transform_1(%arg0: i32, %arg1: i32) -> (i32, i32) {
    %c0_i32 = arith.constant 0 : i32
    %c0_i32_0 = arith.constant 0 : i32
    %c0_i32_1 = arith.constant 0 : i32
    return %c0_i32, %c0_i32_0 : i32, i32
  }
  func.func @transform_2(%arg0: i32, %arg1: i32) -> (i32, i32) {
    %c0_i32 = arith.constant 0 : i32
    %c0_i32_0 = arith.constant 0 : i32
    %c0_i32_1 = arith.constant 0 : i32
    return %c0_i32, %c0_i32_0 : i32, i32
  }
  func.func @transform_3(%arg0: i32, %arg1: i32) -> (i32, i32) {
    %c0_i32 = arith.constant 0 : i32
    %c0_i32_0 = arith.constant 0 : i32
    %c0_i32_1 = arith.constant 0 : i32
    return %c0_i32, %c0_i32_0 : i32, i32
  }
  func.func @transform_4(%arg0: i32, %arg1: i32) -> (i32, i32, i32) {
    %c0_i32 = arith.constant 0 : i32
    %c0_i32_0 = arith.constant 0 : i32
    return %arg0, %arg1, %c0_i32 : i32, i32, i32
  }
  func.func @transform_5(%arg0: i32, %arg1: i32) -> (i32, i32, i32) {
    %c0_i32 = arith.constant 0 : i32
    %c0_i32_0 = arith.constant 0 : i32
    return %arg0, %arg1, %c0_i32 : i32, i32, i32
  }
  func.func @transform_6(%arg0: i32, %arg1: i32) -> (i32, i32, i32) {
    %c0_i32 = arith.constant 0 : i32
    %c0_i32_0 = arith.constant 0 : i32
    return %arg0, %arg1, %c0_i32 : i32, i32, i32
  }
}

</mosaic_0001>

<llo_original>
// kernel: tpu_custom_call.1
$region0: #{tpu_custom_call.1}
  #allocation0 [shape = 'u32[]', space=smem, size = 0x4, offset = 0x4, fixed_abs, tag = 'smem constant byte address 0x4 - core index']
  #allocation1 [shape = 'u32[72,128]{1,0:T(1,128)}', space=vmem, size = 0x9000, scoped, tag = 'internal scratch']
  %s0 = inlined_call_operand.vmem [shape: bf16[2,8,32], index: 0, kind: input, shape index: {}]
  %s1 = inlined_call_operand.vmem [shape: bf16[32,16], index: 1, kind: input, shape index: {}]
  %s2 = inlined_call_operand.vmem [shape: bf16[32,16], index: 2, kind: input, shape index: {}]
  %s3 = inlined_call_operand.vmem [shape: bf16[32,32], index: 3, kind: input, shape index: {}]
  %s4 = inlined_call_operand.hbm [shape: bf16[2,8,16], index: 4, kind: output, shape index: {0}]
  %s5 = inlined_call_operand.hbm [shape: bf16[2,8,16], index: 5, kind: output, shape index: {1}]
  %s6 = inlined_call_operand.hbm [shape: bf16[2,8,32], index: 6, kind: output, shape index: {2}]
  %7 = xla_tuple %s4, %s5, %s6
  %s8 = sld [smem:[#allocation0]]
  $region65: #{tpu_custom_call.1} parent=0
    _
  %s10 = ssub.s32 1, %s8
  %s11 = scalar_select 0, %s10, %s8
  $region1: #{tpu_custom_call.1} parent=0
    #allocation2 [shape = 'u8[4096]{0}', space=vmem, size = 0x1000, scoped, tag = 'output window, operand 0']
    #allocation3 [shape = 's32[2]{0}', space=sflag, size = 0x8, scoped, tag = 'scoped memory for tpu_custom_call.1']
    #allocation4 [shape = 'u8[4096]{0}', space=vmem, size = 0x1000, scoped, tag = 'output window, operand 1']
    #allocation5 [shape = 's32[2]{0}', space=sflag, size = 0x8, scoped, tag = 'scoped memory for tpu_custom_call.1']
    #allocation6 [shape = 'u8[4096]{0}', space=vmem, size = 0x1000, scoped, tag = 'output window, operand 2']
    %12 = vsyncpa [#allocation3], 0
    %s13 = scalar_lea.sflag [#allocation3], 1
    %14 = vsyncpa %s13, 0
    %15 = vsyncpa [#allocation5], 0
    %s16 = scalar_lea.sflag [#allocation5], 1
    %17 = vsyncpa %s16, 0
    loop: start=0, step=1, limit=4
    $region2: #{tpu_custom_call.1} parent=1 // loop_pre_header
      _
    $region3: #{tpu_custom_call.1} parent=1 // loop_header
      %s19 = sphi 0, %s23
      %p20 = scmp.ge.s32.totalorder %s19, 4
      %s26 = sphi 0, %s38
      %s27 = sphi 0, %s34
      %s28 = sphi 0, %s26
      %s29 = sphi 0, %s27
      %s30 = sphi 0, %s28
      %s31 = sphi 0, %s29
      %s43 = sphi 0, %s45
      %s46 = sphi 0, %s43
      %s47 = sphi 0, %s46
      %s63 = sphi 0, %s47
      %s67 = sphi 0, %s67
      %s69 = sphi 0, %s67
      %s70 = sphi 0, %s69
      %s84 = sphi 0, %s70
      %s88 = sphi 0, %s88
      %s90 = sphi 0, %s88
      %s91 = sphi 0, %s90
      %s105 = sphi 0, %s91
      %s109 = sphi 0, %s109
      %s111 = sphi 0, %s109
      %s112 = sphi 0, %s111
      %s126 = sphi 0, %s112
      %s134 = sphi 0, %s136
      %s137 = sphi 0, %s134
      %s138 = sphi 0, %s137
      %s154 = sphi 0, %s138
      %s162 = sphi 0, %s164
      %s165 = sphi 0, %s162
      %s166 = sphi 0, %s165
      %s182 = sphi 0, %s166
      %s190 = sphi 0, %s192
      %s193 = sphi 0, %s190
      %s194 = sphi 0, %s193
      %s210 = sphi 0, %s194
    $region4: #{tpu_custom_call.1} parent=1 // loop_header_branch
      %22 = sbr.rel (%p20) target = $region8
    $region5: #{tpu_custom_call.1} parent=1 // loop_body
      %s24 = ssub.s32 %s19, 1
      %s25 = ssub.s32 %s19, 2
      %s32 = sadd.s32 1, %s27
      %p33 = scmp.ge.s32.totalorder %s32, 1
      %s34 = scalar_select %p33, 0, %s32
      %s35 = sadd.s32 1, %s26
      %s36 = scalar_select %p33, %s35, %s26
      %p37 = scmp.ge.s32.totalorder %s36, 2
      %s38 = scalar_select %p37, 0, %s36
      %s39 = ssub.s32 %s26, %s38
      %s40 = ssub.s32 %s27, %s34
      %s41 = sor.u32 %s39, %s40
      %p42 = scmp.eq.s32.totalorder %s41, 0
      %s44 = sadd.s32 %s43, 1
      %s45 = scalar_select %p42, %s43, %s44
      %p48 = pneg %p42
      %p49 = scmp.eq.s32.totalorder %s19, 1
      %p50 = por %p48, %p49
      %p51 = scmp.ne.s32.totalorder %s43, %s46
      %p52 = scmp.eq.s32.totalorder %s19, 0
      %p53 = por %p51, %p52
      %p54 = scmp.ne.s32.totalorder %s43, %s46
      %p55 = scmp.eq.s32.totalorder %s24, 1
      %p56 = por %p54, %p55
      %p57 = scmp.ne.s32.totalorder %s46, %s47
      %p58 = scmp.eq.s32.totalorder %s24, 0
      %p59 = por %p57, %p58
      %p60 = scmp.ne.s32.totalorder %s46, %s47
      %p61 = scmp.eq.s32.totalorder %s25, 1
      %p62 = por %p60, %p61
      %p64 = scmp.ne.s32.totalorder %s47, %s63
      %p65 = scmp.eq.s32.totalorder %s25, 0
      %p66 = por %p64, %p65
      %s68 = sadd.s32 %s67, 1
      %p71 = scmp.eq.s32.totalorder %s19, 1
      %p72 = scmp.ne.s32.totalorder %s67, %s69
      %p73 = scmp.eq.s32.totalorder %s19, 0
      %p74 = por %p72, %p73
      %p75 = scmp.ne.s32.totalorder %s67, %s69
      %p76 = scmp.eq.s32.totalorder %s24, 1
      %p77 = por %p75, %p76
      %p78 = scmp.ne.s32.totalorder %s69, %s70
      %p79 = scmp.eq.s32.totalorder %s24, 0
      %p80 = por %p78, %p79
      %p81 = scmp.ne.s32.totalorder %s69, %s70
      %p82 = scmp.eq.s32.totalorder %s25, 1
      %p83 = por %p81, %p82
      %p85 = scmp.ne.s32.totalorder %s70, %s84
      %p86 = scmp.eq.s32.totalorder %s25, 0
      %p87 = por %p85, %p86
      %s89 = sadd.s32 %s88, 1
      %p92 = scmp.eq.s32.totalorder %s19, 1
      %p93 = scmp.ne.s32.totalorder %s88, %s90
      %p94 = scmp.eq.s32.totalorder %s19, 0
      %p95 = por %p93, %p94
      %p96 = scmp.ne.s32.totalorder %s88, %s90
      %p97 = scmp.eq.s32.totalorder %s24, 1
      %p98 = por %p96, %p97
      %p99 = scmp.ne.s32.totalorder %s90, %s91
      %p100 = scmp.eq.s32.totalorder %s24, 0
      %p101 = por %p99, %p100
      %p102 = scmp.ne.s32.totalorder %s90, %s91
      %p103 = scmp.eq.s32.totalorder %s25, 1
      %p104 = por %p102, %p103
      %p106 = scmp.ne.s32.totalorder %s91, %s105
      %p107 = scmp.eq.s32.totalorder %s25, 0
      %p108 = por %p106, %p107
      %s110 = sadd.s32 %s109, 1
      %p113 = scmp.eq.s32.totalorder %s19, 1
      %p114 = scmp.ne.s32.totalorder %s109, %s111
      %p115 = scmp.eq.s32.totalorder %s19, 0
      %p116 = por %p114, %p115
      %p117 = scmp.ne.s32.totalorder %s109, %s111
      %p118 = scmp.eq.s32.totalorder %s24, 1
      %p119 = por %p117, %p118
      %p120 = scmp.ne.s32.totalorder %s111, %s112
      %p121 = scmp.eq.s32.totalorder %s24, 0
      %p122 = por %p120, %p121
      %p123 = scmp.ne.s32.totalorder %s111, %s112
      %p124 = scmp.eq.s32.totalorder %s25, 1
      %p125 = por %p123, %p124
      %p127 = scmp.ne.s32.totalorder %s112, %s126
      %p128 = scmp.eq.s32.totalorder %s25, 0
      %p129 = por %p127, %p128
      %s130 = ssub.s32 %s26, %s38
      %s131 = ssub.s32 %s27, %s34
      %s132 = sor.u32 %s130, %s131
      %p133 = scmp.eq.s32.totalorder %s132, 0
      %s135 = sadd.s32 %s134, 1
      %s136 = scalar_select %p133, %s134, %s135
      %p139 = pneg %p133
      %p140 = scmp.eq.s32.totalorder %s19, 1
      %p141 = por %p139, %p140
      %p142 = scmp.ne.s32.totalorder %s134, %s137
      %p143 = scmp.eq.s32.totalorder %s19, 0
      %p144 = por %p142, %p143
      %p145 = scmp.ne.s32.totalorder %s134, %s137
      %p146 = scmp.eq.s32.totalorder %s24, 1
      %p147 = por %p145, %p146
      %p148 = scmp.ne.s32.totalorder %s137, %s138
      %p149 = scmp.eq.s32.totalorder %s24, 0
      %p150 = por %p148, %p149
      %p151 = scmp.ne.s32.totalorder %s137, %s138
      %p152 = scmp.eq.s32.totalorder %s25, 1
      %p153 = por %p151, %p152
      %p155 = scmp.ne.s32.totalorder %s138, %s154
      %p156 = scmp.eq.s32.totalorder %s25, 0
      %p157 = por %p155, %p156
      %s158 = ssub.s32 %s26, %s38
      %s159 = ssub.s32 %s27, %s34
      %s160 = sor.u32 %s158, %s159
      %p161 = scmp.eq.s32.totalorder %s160, 0
      %s163 = sadd.s32 %s162, 1
      %s164 = scalar_select %p161, %s162, %s163
      %p167 = pneg %p161
      %p168 = scmp.eq.s32.totalorder %s19, 1
      %p169 = por %p167, %p168
      %p170 = scmp.ne.s32.totalorder %s162, %s165
      %p171 = scmp.eq.s32.totalorder %s19, 0
      %p172 = por %p170, %p171
      %p173 = scmp.ne.s32.totalorder %s162, %s165
      %p174 = scmp.eq.s32.totalorder %s24, 1
      %p175 = por %p173, %p174
      %p176 = scmp.ne.s32.totalorder %s165, %s166
      %p177 = scmp.eq.s32.totalorder %s24, 0
      %p178 = por %p176, %p177
      %p179 = scmp.ne.s32.totalorder %s165, %s166
      %p180 = scmp.eq.s32.totalorder %s25, 1
      %p181 = por %p179, %p180
      %p183 = scmp.ne.s32.totalorder %s166, %s182
      %p184 = scmp.eq.s32.totalorder %s25, 0
      %p185 = por %p183, %p184
      %s186 = ssub.s32 %s26, %s38
      %s187 = ssub.s32 %s27, %s34
      %s188 = sor.u32 %s186, %s187
      %p189 = scmp.eq.s32.totalorder %s188, 0
      %s191 = sadd.s32 %s190, 1
      %s192 = scalar_select %p189, %s190, %s191
      %p195 = pneg %p189
      %p196 = scmp.eq.s32.totalorder %s19, 1
      %p197 = por %p195, %p196
      %p198 = scmp.ne.s32.totalorder %s190, %s193
      %p199 = scmp.eq.s32.totalorder %s19, 0
      %p200 = por %p198, %p199
      %p201 = scmp.ne.s32.totalorder %s190, %s193
      %p202 = scmp.eq.s32.totalorder %s24, 1
      %p203 = por %p201, %p202
      %p204 = scmp.ne.s32.totalorder %s193, %s194
      %p205 = scmp.eq.s32.totalorder %s24, 0
      %p206 = por %p204, %p205
      %p207 = scmp.ne.s32.totalorder %s193, %s194
      %p208 = scmp.eq.s32.totalorder %s25, 1
      %p209 = por %p207, %p208
      %p211 = scmp.ne.s32.totalorder %s194, %s210
      %p212 = scmp.eq.s32.totalorder %s25, 0
      %p213 = por %p211, %p212
      %p214 = scmp.le.s32.totalorder 1, %s19
      %p215 = scmp.lt.s32.totalorder %s19, 3
      %p216 = pnand %p214, %p215
      %p217 = pneg %p216
      // Predicated region
      $region9: #{tpu_custom_call.1} parent=5 // pred_check
        _
      $region10: #{tpu_custom_call.1} parent=5 // pred_check_branch
        %219 = sbr.rel (%p216) target = $region12
      $region11: #{tpu_custom_call.1} parent=5 // pred_region
        %s220 = ssub.s32 %s19, 1
        // Predicated region
        $region13: #{tpu_custom_call.1} parent=11 // pred_check
          %p221 = pneg %p80
        $region14: #{tpu_custom_call.1} parent=11 // pred_check_branch
          %223 = sbr.rel (%p221) target = $region16
        $region15: #{tpu_custom_call.1} parent=11 // pred_region
          _
        $region16: #{tpu_custom_call.1} parent=11 // pred_fallthru
          _
        // Predicated region
        $region17: #{tpu_custom_call.1} parent=11 // pred_check
          %p224 = pneg %p101
        $region18: #{tpu_custom_call.1} parent=11 // pred_check_branch
          %226 = sbr.rel (%p224) target = $region20
        $region19: #{tpu_custom_call.1} parent=11 // pred_region
          _
        $region20: #{tpu_custom_call.1} parent=11 // pred_fallthru
          _
        // Predicated region
        $region21: #{tpu_custom_call.1} parent=11 // pred_check
          %p227 = pneg %p122
        $region22: #{tpu_custom_call.1} parent=11 // pred_check_branch
          %229 = sbr.rel (%p227) target = $region24
        $region23: #{tpu_custom_call.1} parent=11 // pred_region
          _
        $region24: #{tpu_custom_call.1} parent=11 // pred_fallthru
          _
      $region12: #{tpu_custom_call.1} parent=5 // pred_fallthru
        _
      %p230 = scmp.lt.s32.totalorder %s19, 2
      // Predicated region
      $region25: #{tpu_custom_call.1} parent=5 // pred_check
        %p231 = pneg %p230
      $region26: #{tpu_custom_call.1} parent=5 // pred_check_branch
        %233 = sbr.rel (%p231) target = $region28
      $region27: #{tpu_custom_call.1} parent=5 // pred_region
        // Predicated region
        $region29: #{tpu_custom_call.1} parent=27 // pred_check
          %p234 = pneg %p53
        $region30: #{tpu_custom_call.1} parent=27 // pred_check_branch
          %236 = sbr.rel (%p234) target = $region32
        $region31: #{tpu_custom_call.1} parent=27 // pred_region
          %p237 = scmp.lt.s32.totalorder %s26, 1
          %s238 = scalar_select %p237, %s26, 1
          %p239 = scmp.lt.s32.totalorder %s27, 0
          %s240 = scalar_select %p239, %s27, 0
          %s241 = sadd.s32 %s240, %s238
          %s242 = smul.addr %s241, 4
          %s243 = scalar_lea.vmem %s0, %s242
        $region32: #{tpu_custom_call.1} parent=27 // pred_fallthru
          _
      $region28: #{tpu_custom_call.1} parent=5 // pred_fallthru
        _
      %p244 = scmp.le.s32.totalorder 1, %s19
      %p245 = scmp.lt.s32.totalorder %s19, 3
      %p246 = pnand %p244, %p245
      %p247 = pneg %p246
      // Predicated region
      $region33: #{tpu_custom_call.1} parent=5 // pred_check
        _
      $region34: #{tpu_custom_call.1} parent=5 // pred_check_branch
        %249 = sbr.rel (%p246) target = $region36
      $region35: #{tpu_custom_call.1} parent=5 // pred_region
        %s250 = ssub.s32 %s19, 1
        %p251 = scmp.lt.s32.totalorder %s28, 1
        %s252 = scalar_select %p251, %s28, 1
        %p253 = scmp.lt.s32.totalorder %s29, 0
        %s254 = scalar_select %p253, %s29, 0
        %s255 = sadd.s32 %s254, %s252
        %s256 = smul.addr %s255, 4
        %s257 = scalar_lea.vmem %s0, %s256
        %p258 = pneg %p59
        %p259 = pneg %p56
        %p260 = pneg %p80
        %p261 = pneg %p77
        %p262 = pneg %p101
        %p263 = pneg %p98
        %p264 = pneg %p122
        %p265 = pneg %p119
        %p266 = pneg %p150
        %p267 = pneg %p147
        %s268 = sand.u32 %s137, 1
        %s269 = scalar_lea.sflag [#allocation3], %s268
        %s270 = sand.u32 %s137, 1
        %s271 = smul.addr %s270, 4
        %s272 = scalar_lea.vmem [#allocation2], %s271
        %p273 = pneg %p178
        %p274 = pneg %p175
        %s275 = sand.u32 %s24, 1
        %s276 = scalar_lea.sflag [#allocation5], %s275
        %s277 = sand.u32 %s165, 1
        %s278 = smul.addr %s277, 4
        %s279 = scalar_lea.vmem [#allocation4], %s278
        %p280 = pneg %p206
        %p281 = pneg %p203
        %s282 = sand.u32 %s24, 1
        %s283 = scalar_lea.sflag [#allocation5], %s282
        %s284 = sand.u32 %s193, 1
        %s285 = smul.addr %s284, 4
        %s286 = scalar_lea.vmem [#allocation6], %s285
        %p287 = scmp.lt.s32.totalorder %s28, 1
        %s288 = scalar_select %p287, %s28, 1
        %p289 = scmp.lt.s32.totalorder %s29, 0
        %s290 = scalar_select %p289, %s29, 0
        %s291 = sadd.s32 %s290, %s288
        %s292 = smul.addr %s291, 4
        %s293 = scalar_lea.vmem %s0, %s292
        %v295 = vld [vmem:[%s293] sm:$0xf]
        %v296 = vld [vmem:[%s1] sm:$0xf]
        %v297 = vld [vmem:[%s1 + $0x4] sm:$0xf]
        %v298 = vld [vmem:[%s1 + $0x8] sm:$0xf]
        %v299 = vld [vmem:[%s1 + $0xc] sm:$0xf]
        %v304 = vunpack.c.l.b16 %v296
        %v305 = vunpack.c.l.b16 %v297
        %v306 = vunpack.c.l.b16 %v298
        %v307 = vunpack.c.l.b16 %v299
        %v308 = vpack.c.b16 %v305, %v304
        %v309 = vpack.c.b16 %v307, %v306
        %vm312 = vcmask 261120
        %v314 = vsel %vm312, %v295, 0
        %316 = vmatpush.bf16.msra.mxu0 0
        %317 = vmatpush.bf16.msra.mxu0 0
        %318 = vmatpush.bf16.msra.mxu0 0
        %319 = vmatpush.bf16.msra.mxu0 0
        %320 = vmatpush.bf16.msra.mxu0 0
        %321 = vmatpush.bf16.msra.mxu0 0
        %322 = vmatpush.bf16.msra.mxu0 %v309
        %323 = vmatpush.bf16.msra.mxu0 %v308
        %324 = vmatmul.bf16.gmra.mxu0 %v314
        %v325 = vpop.f32.mrf.mxu0
        %v326 = vadd.f32 0.0, %v325
        %v327 = vpop.f32.mrf.mxu0
        %328 = vdwg.mxu0
        %v329 = vmul.f32 %v326, 0.25
        %v330 = vpack.c.bf16 %v329, %v329
        %vm331 = vcmask 125952
        %332 = vst.msk [vmem:[%s272] sm:$0xf] %vm331, %v330
        %v333 = vld [vmem:[%s2] sm:$0xf]
        %v334 = vld [vmem:[%s2 + $0x4] sm:$0xf]
        %v335 = vld [vmem:[%s2 + $0x8] sm:$0xf]
        %v336 = vld [vmem:[%s2 + $0xc] sm:$0xf]
        %v341 = vunpack.c.l.b16 %v333
        %v342 = vunpack.c.l.b16 %v334
        %v343 = vunpack.c.l.b16 %v335
        %v344 = vunpack.c.l.b16 %v336
        %v345 = vpack.c.b16 %v342, %v341
        %v346 = vpack.c.b16 %v344, %v343
        %349 = vmatpush.bf16.msra.mxu0 0
        %350 = vmatpush.bf16.msra.mxu0 0
        %351 = vmatpush.bf16.msra.mxu0 0
        %352 = vmatpush.bf16.msra.mxu0 0
        %353 = vmatpush.bf16.msra.mxu0 0
        %354 = vmatpush.bf16.msra.mxu0 0
        %355 = vmatpush.bf16.msra.mxu0 %v346
        %356 = vmatpush.bf16.msra.mxu0 %v345
        %357 = vmatmul.bf16.gmra.mxu0 %v314
        %v358 = vpop.f32.mrf.mxu0
        %v359 = vadd.f32 0.0, %v358
        %v360 = vpop.f32.mrf.mxu0
        %361 = vdwg.mxu0
        %v362 = vpack.c.bf16 %v359, %v359
        %363 = vst.msk [vmem:[%s279] sm:$0xf] %vm331, %v362
        %v364 = vld [vmem:[%s3] sm:$0xf]
        %v365 = vld [vmem:[%s3 + $0x4] sm:$0xf]
        %v366 = vld [vmem:[%s3 + $0x8] sm:$0xf]
        %v367 = vld [vmem:[%s3 + $0xc] sm:$0xf]
        %v372 = vunpack.c.l.b16 %v364
        %v373 = vunpack.c.l.b16 %v365
        %v374 = vunpack.c.l.b16 %v366
        %v375 = vunpack.c.l.b16 %v367
        %v376 = vpack.c.b16 %v373, %v372
        %v377 = vpack.c.b16 %v375, %v374
        %380 = vmatpush.bf16.msra.mxu0 0
        %381 = vmatpush.bf16.msra.mxu0 0
        %382 = vmatpush.bf16.msra.mxu0 0
        %383 = vmatpush.bf16.msra.mxu0 0
        %384 = vmatpush.bf16.msra.mxu0 0
        %385 = vmatpush.bf16.msra.mxu0 0
        %386 = vmatpush.bf16.msra.mxu0 %v377
        %387 = vmatpush.bf16.msra.mxu0 %v376
        %388 = vmatmul.bf16.gmra.mxu0 %v314
        %v389 = vpop.f32.mrf.mxu0
        %v390 = vadd.f32 0.0, %v389
        %v391 = vpop.f32.mrf.mxu0
        %392 = vdwg.mxu0
        %v393 = vpack.c.bf16 %v390, %v390
        %vm394 = vcmask 257024
        %395 = vst.msk [vmem:[%s286] sm:$0xf] %vm394, %v393
        %s396 = sand.u32 %s137, 1
        %s397 = scalar_lea.sflag [#allocation3], %s396
        %s398 = sand.u32 %s137, 1
        %s399 = smul.addr %s398, 4
        %s400 = scalar_lea.vmem [#allocation2], %s399
        %s401 = sand.u32 %s24, 1
        %s402 = scalar_lea.sflag [#allocation5], %s401
        %s403 = sand.u32 %s165, 1
        %s404 = smul.addr %s403, 4
        %s405 = scalar_lea.vmem [#allocation4], %s404
        %s406 = sand.u32 %s24, 1
        %s407 = scalar_lea.sflag [#allocation5], %s406
        %s408 = sand.u32 %s193, 1
        %s409 = smul.addr %s408, 4
        %s410 = scalar_lea.vmem [#allocation6], %s409
        // Predicated region
        $region37: #{tpu_custom_call.1} parent=35 // pred_check
          %p411 = pneg %p147
        $region38: #{tpu_custom_call.1} parent=35 // pred_check_branch
          %413 = sbr.rel (%p411) target = $region40
        $region39: #{tpu_custom_call.1} parent=35 // pred_region
          %415 = vsyncadd %s397, 0
          %s416 = sadd.s32 %s29, %s28
          %s417 = smul.addr %s416, 4
          %s418 = scalar_lea.hbm %s4, %s417
          %s420 = sshll.u32 %s400, 4
          %s421 = int_to_ptr.vmem [resolvable:$true] %s420
          %s422 = sshll.u32 %s418, 4
          %s423 = int_to_ptr.hbm [resolvable:$true] %s422
          %425 = dma.vmem_to_hbm [thread:$0]  %s421, 64, %s423, %s397
        $region40: #{tpu_custom_call.1} parent=35 // pred_fallthru
          _
        // Predicated region
        $region41: #{tpu_custom_call.1} parent=35 // pred_check
          %p426 = pneg %p175
        $region42: #{tpu_custom_call.1} parent=35 // pred_check_branch
          %428 = sbr.rel (%p426) target = $region44
        $region43: #{tpu_custom_call.1} parent=35 // pred_region
          %430 = vsyncadd %s402, 0
          %s431 = sadd.s32 %s29, %s28
          %s432 = smul.addr %s431, 4
          %s433 = scalar_lea.hbm %s5, %s432
          %s435 = sshll.u32 %s405, 4
          %s436 = int_to_ptr.vmem [resolvable:$true] %s435
          %s437 = sshll.u32 %s433, 4
          %s438 = int_to_ptr.hbm [resolvable:$true] %s437
          %440 = dma.vmem_to_hbm [thread:$0]  %s436, 64, %s438, %s402
        $region44: #{tpu_custom_call.1} parent=35 // pred_fallthru
          _
        // Predicated region
        $region45: #{tpu_custom_call.1} parent=35 // pred_check
          %p441 = pneg %p203
        $region46: #{tpu_custom_call.1} parent=35 // pred_check_branch
          %443 = sbr.rel (%p441) target = $region48
        $region47: #{tpu_custom_call.1} parent=35 // pred_region
          %445 = vsyncadd %s407, 0
          %s446 = sadd.s32 %s29, %s28
          %s447 = smul.addr %s446, 4
          %s448 = scalar_lea.hbm %s6, %s447
          %s450 = sshll.u32 %s410, 4
          %s451 = int_to_ptr.vmem [resolvable:$true] %s450
          %s452 = sshll.u32 %s448, 4
          %s453 = int_to_ptr.hbm [resolvable:$true] %s452
          %455 = dma.vmem_to_hbm [thread:$0]  %s451, 64, %s453, %s407
        $region48: #{tpu_custom_call.1} parent=35 // pred_fallthru
          _
      $region36: #{tpu_custom_call.1} parent=5 // pred_fallthru
        _
      %p456 = scmp.le.s32.totalorder 2, %s19
      // Predicated region
      $region49: #{tpu_custom_call.1} parent=5 // pred_check
        %p457 = pneg %p456
      $region50: #{tpu_custom_call.1} parent=5 // pred_check_branch
        %459 = sbr.rel (%p457) target = $region52
      $region51: #{tpu_custom_call.1} parent=5 // pred_region
        %s460 = ssub.s32 %s19, 2
        // Predicated region
        $region53: #{tpu_custom_call.1} parent=51 // pred_check
          %p461 = pneg %p153
        $region54: #{tpu_custom_call.1} parent=51 // pred_check_branch
          %463 = sbr.rel (%p461) target = $region56
        $region55: #{tpu_custom_call.1} parent=51 // pred_region
          %s464 = sand.u32 %s138, 1
          %s465 = scalar_lea.sflag [#allocation3], %s464
          %s466 = sand.u32 %s138, 1
          %s467 = smul.addr %s466, 4
          %s468 = scalar_lea.vmem [#allocation2], %s467
          %470 = dma.done %s465, 64
        $region56: #{tpu_custom_call.1} parent=51 // pred_fallthru
          _
        // Predicated region
        $region57: #{tpu_custom_call.1} parent=51 // pred_check
          %p471 = pneg %p181
        $region58: #{tpu_custom_call.1} parent=51 // pred_check_branch
          %473 = sbr.rel (%p471) target = $region60
        $region59: #{tpu_custom_call.1} parent=51 // pred_region
          %s474 = sand.u32 %s25, 1
          %s475 = scalar_lea.sflag [#allocation5], %s474
          %s476 = sand.u32 %s166, 1
          %s477 = smul.addr %s476, 4
          %s478 = scalar_lea.vmem [#allocation4], %s477
          %480 = dma.done %s475, 64
        $region60: #{tpu_custom_call.1} parent=51 // pred_fallthru
          _
        // Predicated region
        $region61: #{tpu_custom_call.1} parent=51 // pred_check
          %p481 = pneg %p209
        $region62: #{tpu_custom_call.1} parent=51 // pred_check_branch
          %483 = sbr.rel (%p481) target = $region64
        $region63: #{tpu_custom_call.1} parent=51 // pred_region
          %s484 = sand.u32 %s25, 1
          %s485 = scalar_lea.sflag [#allocation5], %s484
          %s486 = sand.u32 %s194, 1
          %s487 = smul.addr %s486, 4
          %s488 = scalar_lea.vmem [#allocation6], %s487
          %490 = dma.done %s485, 64
        $region64: #{tpu_custom_call.1} parent=51 // pred_fallthru
          _
      $region52: #{tpu_custom_call.1} parent=5 // pred_fallthru
        _
    $region6: #{tpu_custom_call.1} parent=1 // loop_footer
      %s23 = sadd.s32 1, %s19
    $region7: #{tpu_custom_call.1} parent=1 // loop_footer_branch
      %18 = sbr.rel target = $region3
    $region8: #{tpu_custom_call.1} parent=1 // loop_exit
      _
    %491 = vsyncpa [#allocation3], 1
    %s492 = scalar_lea.sflag [#allocation3], 1
    %493 = vsyncpa %s492, 1
    %494 = vsyncpa [#allocation5], 1
    %s495 = scalar_lea.sflag [#allocation5], 1
    %496 = vsyncpa %s495, 1

</llo_original>
